<compile_context>
chip_gen: v6e
topology: v6e:2x2x1
jax: 0.10.0
libtpu: 0.0.40
codegen_flags: <defaults>
</compile_context>

<pallas_src>
import functools
import math

import jax
import jax.numpy as jnp
from jax import lax
from jax.experimental import pallas as pl
from jax.experimental.pallas import tpu as pltpu


def _round_up(x, m):
    return ((x + m - 1) // m) * m


def _flash_attn_kernel(q_ref, k_ref, v_ref, o_ref, qs_sc, m_sc, l_sc, acc_sc,
                       *, scale, lk_valid, block_k, needs_mask, compute_dtype):
    kv = pl.program_id(2)
    last_kv = pl.num_programs(2) - 1

    @pl.when(kv == 0)
    def _():
        # The Q block is resident across the whole kv axis: fold 1/sqrt(d) into
        # it and cast to the MXU input dtype ONCE (hoisted out of the kv loop).
        qs_sc[...] = (q_ref[...].astype(jnp.float32) * scale).astype(compute_dtype)
        m_sc[...] = jnp.full(m_sc.shape, -jnp.inf, jnp.float32)
        l_sc[...] = jnp.zeros(l_sc.shape, jnp.float32)
        acc_sc[...] = jnp.zeros(acc_sc.shape, jnp.float32)

    q = qs_sc[...]                               # (Tq, Dp)  compute_dtype
    k = k_ref[...].astype(compute_dtype)         # (Tk, Dp)
    v = v_ref[...].astype(compute_dtype)         # (Tk, Dvp)

    # scores = Q @ K^T: contract the shared D axis directly (no K transpose).
    # bf16 operands + f32 accumulation hit the single-pass MXU peak.
    s = lax.dot_general(q, k, dimension_numbers=(((1,), (1,)), ((), ())),
                        preferred_element_type=jnp.float32)        # (Tq, Tk) f32

    def online_softmax_update(s_tile):
        m_prev = m_sc[...]
        m_new = jnp.maximum(m_prev, jnp.max(s_tile, axis=-1, keepdims=True))
        alpha = jnp.exp(m_prev - m_new)
        p = jnp.exp(s_tile - m_new)
        l_sc[...] = alpha * l_sc[...] + jnp.sum(p, axis=-1, keepdims=True)
        acc_sc[...] = alpha * acc_sc[...] + lax.dot_general(
            p.astype(compute_dtype), v,
            dimension_numbers=(((1,), (0,)), ((), ())),
            preferred_element_type=jnp.float32)
        m_sc[...] = m_new

    if needs_mask:
        # Only the LAST kv tile contains padded key columns, so pay the
        # iota + compare + select only there (pl.when-gated epilogue step).
        @pl.when(kv != last_kv)
        def _():
            online_softmax_update(s)

        @pl.when(kv == last_kv)
        def _():
            col = kv * block_k + lax.broadcasted_iota(jnp.int32, s.shape, 1)
            online_softmax_update(jnp.where(col < lk_valid, s, -jnp.inf))
    else:
        online_softmax_update(s)

    @pl.when(kv == last_kv)
    def _():
        # Normalize once per (batch, q-tile); approx reciprocal uses the EUP slot.
        inv_l = pl.reciprocal(l_sc[...], approx=True)
        o_ref[...] = (acc_sc[...] * inv_l).astype(o_ref.dtype)


def dot_product_attention(queries, keys, values, valid_lens=None, *,
                          block_q=512, block_k=512, use_bf16_matmul=True):
    """queries: (B, Lq, D), keys: (B, Lk, D), values: (B, Lk, Dv)."""
    del valid_lens  # unused by the reference PyTorch forward (plain softmax)
    B, Lq, D = queries.shape
    Bk, Lk, Dk = keys.shape
    Bv, Lkv, Dv = values.shape
    assert D == Dk and Bk == B and Bv == B and Lkv == Lk

    scale = 1.0 / math.sqrt(D)
    compute_dtype = jnp.bfloat16 if use_bf16_matmul else jnp.float32
    # Sublane packing of the (possibly bf16) streamed tiles: 16 for bf16, 8 for f32.
    sub = 16 if use_bf16_matmul else 8

    # Lane-dense feature dims (multiples of 128); sublane/tile aligned sequence dims.
    Dp = _round_up(D, 128)
    Dvp = _round_up(Dv, 128)
    Tq = min(_round_up(block_q, sub), _round_up(Lq, sub))
    Tk = min(_round_up(block_k, sub), _round_up(Lk, sub))
    Lq_pad = _round_up(Lq, Tq)
    Lk_pad = _round_up(Lk, Tk)

    def pad3(x, L_pad, F_pad):
        _, L, F = x.shape
        if L == L_pad and F == F_pad:
            return x
        return jnp.pad(x, ((0, 0), (0, L_pad - L), (0, F_pad - F)))

    # K/V are re-streamed from HBM once per (batch, q-tile): store them in the
    # MXU input dtype to halve that traffic (numerically identical to casting
    # in-kernel, since the MXU consumes bf16 operands either way).
    kv_dtype = compute_dtype if use_bf16_matmul else keys.dtype
    q = pad3(queries, Lq_pad, Dp)
    k = pad3(keys.astype(kv_dtype), Lk_pad, Dp)
    v = pad3(values.astype(kv_dtype), Lk_pad, Dvp)
    # TODO(synk): if Dv < 128 were a production case, pack a head axis into the
    #             lane dimension instead of zero-padding Dv up to 128.

    needs_mask = Lk_pad != Lk
    grid = (B, Lq_pad // Tq, Lk_pad // Tk)

    kernel = functools.partial(
        _flash_attn_kernel, scale=scale, lk_valid=Lk, block_k=Tk,
        needs_mask=needs_mask, compute_dtype=compute_dtype)

    # Explicit VMEM budget (v7x has 64 MiB physical / 32 MiB scoped default).
    kv_bufs = 3
    itm = lambda dt: jnp.dtype(dt).itemsize
    est = (2 * Tq * Dp * itm(q.dtype)               # q, double-buffered
           + kv_bufs * Tk * Dp * itm(kv_dtype)      # k blocks
           + kv_bufs * Tk * Dvp * itm(kv_dtype)     # v blocks
           + 2 * Tq * Dvp * itm(queries.dtype)      # out, double-buffered
           + Tq * Dp * itm(compute_dtype)           # scaled-q scratch
           + 2 * Tq * 128 * 4                       # m, l (lane-padded tiles)
           + Tq * Dvp * 4)                          # f32 accumulator
    vmem_limit = int(min(64 * 1024 * 1024, max(2 * est, 32 * 1024 * 1024)))

    out_shape = jax.ShapeDtypeStruct((B, Lq_pad, Dvp), queries.dtype)

    def build_call(kv_buffer_count):
        kv_kwargs = {}
        if kv_buffer_count is not None and hasattr(pl, "Buffered"):
            kv_kwargs = dict(pipeline_mode=pl.Buffered(kv_buffer_count))
        return pl.pallas_call(
            kernel,
            out_shape=out_shape,
            grid_spec=pltpu.PrefetchScalarGridSpec(
                num_scalar_prefetch=0,
                grid=grid,
                in_specs=[
                    pl.BlockSpec((None, Tq, Dp), lambda b, qi, kvi: (b, qi, 0)),
                    pl.BlockSpec((None, Tk, Dp), lambda b, qi, kvi: (b, kvi, 0),
                                 **kv_kwargs),
                    pl.BlockSpec((None, Tk, Dvp), lambda b, qi, kvi: (b, kvi, 0),
                                 **kv_kwargs),
                ],
                out_specs=pl.BlockSpec((None, Tq, Dvp),
                                       lambda b, qi, kvi: (b, qi, 0)),
                scratch_shapes=[
                    pltpu.VMEM((Tq, Dp), compute_dtype),   # scaled q (resident)
                    pltpu.VMEM((Tq, 1), jnp.float32),      # running max  m
                    pltpu.VMEM((Tq, 1), jnp.float32),      # running sum  l
                    pltpu.VMEM((Tq, Dvp), jnp.float32),    # output accumulator
                ],
            ),
            compiler_params=pltpu.CompilerParams(
                dimension_semantics=("parallel", "parallel", "arbitrary"),
                vmem_limit_bytes=vmem_limit),
        )

    if hasattr(pl, "Buffered"):
        try:
            out = build_call(kv_bufs)(q, k, v)
        except Exception:
            # Fallback: retry with the default double-buffered pipeline if this
            # Pallas build rejects pipeline_mode on TPU BlockSpecs.
            out = build_call(None)(q, k, v)
    else:
        out = build_call(None)(q, k, v)

    return out[:, :Lq, :Dv]


def _reference(queries, keys, values):
    d = queries.shape[-1]
    scores = jnp.einsum("bqd,bkd->bqk", queries, keys) / math.sqrt(d)
    weights = jax.nn.softmax(scores, axis=-1)
    return jnp.einsum("bqk,bkv->bqv", weights, values)


if __name__ == "__main__":
    key = jax.random.PRNGKey(0)
    kq, kk, kv_ = jax.random.split(key, 3)

    # Small shapes matching the torch.bmm layout (B, L, D).
    B, Lq, Lk, D, Dv = 2, 8, 8, 32, 32
    q = jax.random.normal(kq, (B, Lq, D), dtype=jnp.float32)
    k = jax.random.normal(kk, (B, Lk, D), dtype=jnp.float32)
    v = jax.random.normal(kv_, (B, Lk, Dv), dtype=jnp.float32)
    ref = _reference(q, k, v)

    # Fast path (default): bf16 MXU matmuls + f32 accumulation -> loose tolerance.
    out = jax.block_until_ready(dot_product_attention(q, k, v))
    assert out.shape == (B, Lq, Dv)
    assert jnp.allclose(out, ref, atol=1e-1, rtol=1e-1), "bf16 path mismatch"

    # Exact-parity path: f32 matmuls, tight tolerance vs the f32 reference.
    out_f32 = jax.block_until_ready(
        dot_product_attention(q, k, v, use_bf16_matmul=False))
    assert jnp.allclose(out_f32, ref, atol=2e-3, rtol=2e-3), "f32 path mismatch"

    # Multi-tile flash path: several q/kv tiles plus a masked (padded) last kv tile.
    B2, Lq2, Lk2 = 2, 40, 40
    kq2, kk2, kv2 = jax.random.split(jax.random.PRNGKey(0), 3)
    q2 = jax.random.normal(kq2, (B2, Lq2, D), dtype=jnp.float32)
    k2 = jax.random.normal(kk2, (B2, Lk2, D), dtype=jnp.float32)
    v2 = jax.random.normal(kv2, (B2, Lk2, Dv), dtype=jnp.float32)
    ref2 = _reference(q2, k2, v2)

    out2 = jax.block_until_ready(
        dot_product_attention(q2, k2, v2, block_q=32, block_k=32))
    assert out2.shape == (B2, Lq2, Dv)
    assert jnp.allclose(out2, ref2, atol=1e-1, rtol=1e-1), "bf16 tiled mismatch"

    out2_f32 = jax.block_until_ready(
        dot_product_attention(q2, k2, v2, block_q=32, block_k=32,
                              use_bf16_matmul=False))
    assert jnp.allclose(out2_f32, ref2, atol=2e-3, rtol=2e-3), "f32 tiled mismatch"

    print("KERNEL_OK")
</pallas_src>

<mosaic_0001>
module attributes {stable_mosaic.version = 11 : i64} {
  func.func @_flash_attn_kernel(%arg0: i32, %arg1: i32, %arg2: i32, %arg3: memref<1x16x128xf32, #tpu.memory_space<vmem>>, %arg4: memref<1x16x128xbf16, #tpu.memory_space<vmem>>, %arg5: memref<1x16x128xbf16, #tpu.memory_space<vmem>>, %arg6: memref<1x16x128xf32, #tpu.memory_space<vmem>>, %arg7: memref<16x128xbf16, #tpu.memory_space<vmem>>, %arg8: memref<16x1xf32, #tpu.memory_space<vmem>>, %arg9: memref<16x1xf32, #tpu.memory_space<vmem>>, %arg10: memref<16x128xf32, #tpu.memory_space<vmem>>) attributes {dimension_semantics = [#tpu.dimension_semantics<parallel>, #tpu.dimension_semantics<parallel>, #tpu.dimension_semantics<arbitrary>], iteration_bounds = array<i64: 2, 1, 1>, scalar_prefetch = 0 : i64, scratch_operands = 4 : i64, tpu.core_type = #tpu.core_type<tc>, window_params = [{transform_indices = @transform_0, window_bounds = array<i64: 1, 16, 128>}, {transform_indices = @transform_1, window_bounds = array<i64: 1, 16, 128>}, {transform_indices = @transform_2, window_bounds = array<i64: 1, 16, 128>}, {transform_indices = @transform_3, window_bounds = array<i64: 1, 16, 128>}]} {
    %c0_i32 = arith.constant 0 : i32
    %0 = arith.cmpi eq, %arg2, %c0_i32 : i32
    %1 = arith.extui %0 : i1 to i32
    %c0_i32_0 = arith.constant 0 : i32
    %2 = arith.cmpi ne, %1, %c0_i32_0 : i32
    scf.if %2 {
      %c0_14 = arith.constant 0 : index
      %c0_15 = arith.constant 0 : index
      %c0_16 = arith.constant 0 : index
      %18 = vector.load %arg3[%c0_14, %c0_15, %c0_16] : memref<1x16x128xf32, #tpu.memory_space<vmem>>, vector<1x16x128xf32>
      %19 = vector.shape_cast %18 : vector<1x16x128xf32> to vector<16x128xf32>
      %cst_17 = arith.constant 0.176776692 : f32
      %20 = vector.broadcast %cst_17 : f32 to vector<16x128xf32>
      %21 = arith.mulf %19, %20 : vector<16x128xf32>
      %22 = arith.truncf %21 : vector<16x128xf32> to vector<16x128xbf16>
      %c0_18 = arith.constant 0 : index
      %c0_19 = arith.constant 0 : index
      %23 = vector.load %arg7[%c0_18, %c0_19] : memref<16x128xbf16, #tpu.memory_space<vmem>>, vector<16x128xbf16>
      tpu.vector_store %arg7[%c0_18, %c0_19], %22 {strides = array<i32>} : memref<16x128xbf16, #tpu.memory_space<vmem>>, vector<16x128xbf16>,
      %cst_20 = arith.constant 0xFF800000 : f32
      %24 = vector.broadcast %cst_20 : f32 to vector<16x1xf32>
      %c0_21 = arith.constant 0 : index
      %c0_22 = arith.constant 0 : index
      %25 = vector.load %arg8[%c0_21, %c0_22] : memref<16x1xf32, #tpu.memory_space<vmem>>, vector<16x1xf32>
      tpu.vector_store %arg8[%c0_21, %c0_22], %24 {strides = array<i32>} : memref<16x1xf32, #tpu.memory_space<vmem>>, vector<16x1xf32>,
      %cst_23 = arith.constant 0.000000e+00 : f32
      %26 = vector.broadcast %cst_23 : f32 to vector<16x1xf32>
      %c0_24 = arith.constant 0 : index
      %c0_25 = arith.constant 0 : index
      %27 = vector.load %arg9[%c0_24, %c0_25] : memref<16x1xf32, #tpu.memory_space<vmem>>, vector<16x1xf32>
      tpu.vector_store %arg9[%c0_24, %c0_25], %26 {strides = array<i32>} : memref<16x1xf32, #tpu.memory_space<vmem>>, vector<16x1xf32>,
      %cst_26 = arith.constant 0.000000e+00 : f32
      %28 = vector.broadcast %cst_26 : f32 to vector<16x128xf32>
      %c0_27 = arith.constant 0 : index
      %c0_28 = arith.constant 0 : index
      %29 = vector.load %arg10[%c0_27, %c0_28] : memref<16x128xf32, #tpu.memory_space<vmem>>, vector<16x128xf32>
      tpu.vector_store %arg10[%c0_27, %c0_28], %28 {strides = array<i32>} : memref<16x128xf32, #tpu.memory_space<vmem>>, vector<16x128xf32>,
    } else {
    }
    %c0 = arith.constant 0 : index
    %c0_1 = arith.constant 0 : index
    %3 = vector.load %arg7[%c0, %c0_1] : memref<16x128xbf16, #tpu.memory_space<vmem>>, vector<16x128xbf16>
    %c0_2 = arith.constant 0 : index
    %c0_3 = arith.constant 0 : index
    %c0_4 = arith.constant 0 : index
    %4 = vector.load %arg4[%c0_2, %c0_3, %c0_4] : memref<1x16x128xbf16, #tpu.memory_space<vmem>>, vector<1x16x128xbf16>
    %5 = vector.shape_cast %4 : vector<1x16x128xbf16> to vector<16x128xbf16>
    %c0_5 = arith.constant 0 : index
    %c0_6 = arith.constant 0 : index
    %c0_7 = arith.constant 0 : index
    %6 = vector.load %arg5[%c0_5, %c0_6, %c0_7] : memref<1x16x128xbf16, #tpu.memory_space<vmem>>, vector<1x16x128xbf16>
    %7 = vector.shape_cast %6 : vector<1x16x128xbf16> to vector<16x128xbf16>
    %cst = arith.constant dense<0.000000e+00> : vector<16x16xf32>
    %8 = tpu.matmul %3, %5, %cst {dimension_numbers = #tpu.dot_dimension_numbers<[1], [1], [0], [0], [0, 0, 1, 0], [], []>} : vector<16x128xbf16>, vector<16x128xbf16>, vector<16x16xf32> -> vector<16x16xf32>
    %c0_i32_8 = arith.constant 0 : i32
    %9 = arith.cmpi ne, %arg2, %c0_i32_8 : i32
    %10 = arith.extui %9 : i1 to i32
    %c0_i32_9 = arith.constant 0 : i32
    %11 = arith.cmpi ne, %10, %c0_i32_9 : i32
    scf.if %11 {
      %c0_14 = arith.constant 0 : index
      %c0_15 = arith.constant 0 : index
      %18 = vector.load %arg8[%c0_14, %c0_15] : memref<16x1xf32, #tpu.memory_space<vmem>>, vector<16x1xf32>
      %cst_16 = arith.constant dense<0xFF800000> : vector<16xf32>
      %19 = vector.multi_reduction <maximumf>, %8, %cst_16 [1] : vector<16x16xf32> to vector<16xf32>
      %20 = vector.shape_cast %19 : vector<16xf32> to vector<16x1xf32>
      %21 = arith.maximumf %18, %20 : vector<16x1xf32>
      %22 = arith.subf %18, %21 : vector<16x1xf32>
      %23 = math.exp %22 : vector<16x1xf32>
      %24 = vector.broadcast %21 : vector<16x1xf32> to vector<16x16xf32>
      %25 = arith.subf %8, %24 : vector<16x16xf32>
      %26 = math.exp %25 : vector<16x16xf32>
      %c0_17 = arith.constant 0 : index
      %c0_18 = arith.constant 0 : index
      %27 = vector.load %arg9[%c0_17, %c0_18] : memref<16x1xf32, #tpu.memory_space<vmem>>, vector<16x1xf32>
      %28 = arith.mulf %23, %27 : vector<16x1xf32>
      %cst_19 = arith.constant dense<0.000000e+00> : vector<16xf32>
      %29 = vector.multi_reduction <add>, %26, %cst_19 [1] : vector<16x16xf32> to vector<16xf32>
      %30 = vector.shape_cast %29 : vector<16xf32> to vector<16x1xf32>
      %31 = arith.addf %28, %30 : vector<16x1xf32>
      %c0_20 = arith.constant 0 : index
      %c0_21 = arith.constant 0 : index
      %32 = vector.load %arg9[%c0_20, %c0_21] : memref<16x1xf32, #tpu.memory_space<vmem>>, vector<16x1xf32>
      tpu.vector_store %arg9[%c0_20, %c0_21], %31 {strides = array<i32>} : memref<16x1xf32, #tpu.memory_space<vmem>>, vector<16x1xf32>,
      %c0_22 = arith.constant 0 : index
      %c0_23 = arith.constant 0 : index
      %33 = vector.load %arg10[%c0_22, %c0_23] : memref<16x128xf32, #tpu.memory_space<vmem>>, vector<16x128xf32>
      %34 = vector.broadcast %23 : vector<16x1xf32> to vector<16x128xf32>
      %35 = arith.mulf %34, %33 : vector<16x128xf32>
      %36 = arith.truncf %26 : vector<16x16xf32> to vector<16x16xbf16>
      %cst_24 = arith.constant dense<0.000000e+00> : vector<16x128xf32>
      %37 = tpu.matmul %36, %7, %cst_24 {dimension_numbers = #tpu.dot_dimension_numbers<[1], [0], [0], [1], [0, 0, 1, 1], [], []>} : vector<16x16xbf16>, vector<16x128xbf16>, vector<16x128xf32> -> vector<16x128xf32>
      %38 = arith.addf %35, %37 : vector<16x128xf32>
      %c0_25 = arith.constant 0 : index
      %c0_26 = arith.constant 0 : index
      %39 = vector.load %arg10[%c0_25, %c0_26] : memref<16x128xf32, #tpu.memory_space<vmem>>, vector<16x128xf32>
      tpu.vector_store %arg10[%c0_25, %c0_26], %38 {strides = array<i32>} : memref<16x128xf32, #tpu.memory_space<vmem>>, vector<16x128xf32>,
      %c0_27 = arith.constant 0 : index
      %c0_28 = arith.constant 0 : index
      %40 = vector.load %arg8[%c0_27, %c0_28] : memref<16x1xf32, #tpu.memory_space<vmem>>, vector<16x1xf32>
      tpu.vector_store %arg8[%c0_27, %c0_28], %21 {strides = array<i32>} : memref<16x1xf32, #tpu.memory_space<vmem>>, vector<16x1xf32>,
    } else {
    }
    %c0_i32_10 = arith.constant 0 : i32
    %12 = arith.cmpi eq, %arg2, %c0_i32_10 : i32
    %13 = arith.extui %12 : i1 to i32
    %c0_i32_11 = arith.constant 0 : i32
    %14 = arith.cmpi ne, %13, %c0_i32_11 : i32
    scf.if %14 {
      %c16_i32 = arith.constant 16 : i32
      %18 = arith.muli %arg2, %c16_i32 : i32
      %19 = tpu.iota {dimensions = array<i32: 1>} : vector<16x16xi32>
      %20 = vector.broadcast %18 : i32 to vector<16x16xi32>
      %21 = arith.addi %20, %19 : vector<16x16xi32>
      %c8_i32 = arith.constant 8 : i32
      %22 = vector.broadcast %c8_i32 : i32 to vector<16x16xi32>
      %23 = arith.cmpi slt, %21, %22 : vector<16x16xi32>
      %cst_14 = arith.constant 0xFF800000 : f32
      %24 = vector.broadcast %cst_14 : f32 to vector<16x16xf32>
      %25 = arith.select %23, %8, %24 : vector<16x16xi1>, vector<16x16xf32>
      %c0_15 = arith.constant 0 : index
      %c0_16 = arith.constant 0 : index
      %26 = vector.load %arg8[%c0_15, %c0_16] : memref<16x1xf32, #tpu.memory_space<vmem>>, vector<16x1xf32>
      %cst_17 = arith.constant dense<0xFF800000> : vector<16xf32>
      %27 = vector.multi_reduction <maximumf>, %25, %cst_17 [1] : vector<16x16xf32> to vector<16xf32>
      %28 = vector.shape_cast %27 : vector<16xf32> to vector<16x1xf32>
      %29 = arith.maximumf %26, %28 : vector<16x1xf32>
      %30 = arith.subf %26, %29 : vector<16x1xf32>
      %31 = math.exp %30 : vector<16x1xf32>
      %32 = vector.broadcast %29 : vector<16x1xf32> to vector<16x16xf32>
      %33 = arith.subf %25, %32 : vector<16x16xf32>
      %34 = math.exp %33 : vector<16x16xf32>
      %c0_18 = arith.constant 0 : index
      %c0_19 = arith.constant 0 : index
      %35 = vector.load %arg9[%c0_18, %c0_19] : memref<16x1xf32, #tpu.memory_space<vmem>>, vector<16x1xf32>
      %36 = arith.mulf %31, %35 : vector<16x1xf32>
      %cst_20 = arith.constant dense<0.000000e+00> : vector<16xf32>
      %37 = vector.multi_reduction <add>, %34, %cst_20 [1] : vector<16x16xf32> to vector<16xf32>
      %38 = vector.shape_cast %37 : vector<16xf32> to vector<16x1xf32>
      %39 = arith.addf %36, %38 : vector<16x1xf32>
      %c0_21 = arith.constant 0 : index
      %c0_22 = arith.constant 0 : index
      %40 = vector.load %arg9[%c0_21, %c0_22] : memref<16x1xf32, #tpu.memory_space<vmem>>, vector<16x1xf32>
      tpu.vector_store %arg9[%c0_21, %c0_22], %39 {strides = array<i32>} : memref<16x1xf32, #tpu.memory_space<vmem>>, vector<16x1xf32>,
      %c0_23 = arith.constant 0 : index
      %c0_24 = arith.constant 0 : index
      %41 = vector.load %arg10[%c0_23, %c0_24] : memref<16x128xf32, #tpu.memory_space<vmem>>, vector<16x128xf32>
      %42 = vector.broadcast %31 : vector<16x1xf32> to vector<16x128xf32>
      %43 = arith.mulf %42, %41 : vector<16x128xf32>
      %44 = arith.truncf %34 : vector<16x16xf32> to vector<16x16xbf16>
      %cst_25 = arith.constant dense<0.000000e+00> : vector<16x128xf32>
      %45 = tpu.matmul %44, %7, %cst_25 {dimension_numbers = #tpu.dot_dimension_numbers<[1], [0], [0], [1], [0, 0, 1, 1], [], []>} : vector<16x16xbf16>, vector<16x128xbf16>, vector<16x128xf32> -> vector<16x128xf32>
      %46 = arith.addf %43, %45 : vector<16x128xf32>
      %c0_26 = arith.constant 0 : index
      %c0_27 = arith.constant 0 : index
      %47 = vector.load %arg10[%c0_26, %c0_27] : memref<16x128xf32, #tpu.memory_space<vmem>>, vector<16x128xf32>
      tpu.vector_store %arg10[%c0_26, %c0_27], %46 {strides = array<i32>} : memref<16x128xf32, #tpu.memory_space<vmem>>, vector<16x128xf32>,
      %c0_28 = arith.constant 0 : index
      %c0_29 = arith.constant 0 : index
      %48 = vector.load %arg8[%c0_28, %c0_29] : memref<16x1xf32, #tpu.memory_space<vmem>>, vector<16x1xf32>
      tpu.vector_store %arg8[%c0_28, %c0_29], %29 {strides = array<i32>} : memref<16x1xf32, #tpu.memory_space<vmem>>, vector<16x1xf32>,
    } else {
    }
    %c0_i32_12 = arith.constant 0 : i32
    %15 = arith.cmpi eq, %arg2, %c0_i32_12 : i32
    %16 = arith.extui %15 : i1 to i32
    %c0_i32_13 = arith.constant 0 : i32
    %17 = arith.cmpi ne, %16, %c0_i32_13 : i32
    scf.if %17 {
      %c0_14 = arith.constant 0 : index
      %c0_15 = arith.constant 0 : index
      %18 = vector.load %arg9[%c0_14, %c0_15] : memref<16x1xf32, #tpu.memory_space<vmem>>, vector<16x1xf32>
      %19 = tpu.reciprocal %18 {approx = true} : vector<16x1xf32> -> vector<16x1xf32>
      %c0_16 = arith.constant 0 : index
      %c0_17 = arith.constant 0 : index
      %20 = vector.load %arg10[%c0_16, %c0_17] : memref<16x128xf32, #tpu.memory_space<vmem>>, vector<16x128xf32>
      %21 = vector.broadcast %19 : vector<16x1xf32> to vector<16x128xf32>
      %22 = arith.mulf %20, %21 : vector<16x128xf32>
      %c0_18 = arith.constant 0 : index
      %c0_19 = arith.constant 0 : index
      %c0_20 = arith.constant 0 : index
      %23 = vector.load %arg6[%c0_18, %c0_19, %c0_20] : memref<1x16x128xf32, #tpu.memory_space<vmem>>, vector<1x16x128xf32>
      %24 = vector.shape_cast %23 : vector<1x16x128xf32> to vector<16x128xf32>
      %25 = vector.shape_cast %22 : vector<16x128xf32> to vector<1x16x128xf32>
      tpu.vector_store %arg6[%c0_18, %c0_19, %c0_20], %25 {strides = array<i32>} : memref<1x16x128xf32, #tpu.memory_space<vmem>>, vector<1x16x128xf32>,
    } else {
    }
    return
  }
  func.func @transform_0(%arg0: i32, %arg1: i32, %arg2: i32) -> (i32, i32, i32) {
    %c0_i32 = arith.constant 0 : i32
    %c0_i32_0 = arith.constant 0 : i32
    return %arg0, %arg1, %c0_i32 : i32, i32, i32
  }
  func.func @transform_1(%arg0: i32, %arg1: i32, %arg2: i32) -> (i32, i32, i32) {
    %c0_i32 = arith.constant 0 : i32
    %c0_i32_0 = arith.constant 0 : i32
    return %arg0, %arg2, %c0_i32 : i32, i32, i32
  }
  func.func @transform_2(%arg0: i32, %arg1: i32, %arg2: i32) -> (i32, i32, i32) {
    %c0_i32 = arith.constant 0 : i32
    %c0_i32_0 = arith.constant 0 : i32
    return %arg0, %arg2, %c0_i32 : i32, i32, i32
  }
  func.func @transform_3(%arg0: i32, %arg1: i32, %arg2: i32) -> (i32, i32, i32) {
    %c0_i32 = arith.constant 0 : i32
    %c0_i32_0 = arith.constant 0 : i32
    return %arg0, %arg1, %c0_i32 : i32, i32, i32
  }
}

</mosaic_0001>

<llo_original>
// kernel: tpu_custom_call.1
$region0: #{tpu_custom_call.1}
  #allocation0 [shape = 'u32[]', space=smem, size = 0x4, offset = 0x4, fixed_abs, tag = 'smem constant byte address 0x4 - core index']
  #allocation1 [shape = 'u32[144,128]{1,0:T(1,128)}', space=vmem, size = 0x12000, scoped, tag = 'internal scratch']
  #allocation2 [shape = 'bf16[16,128]{1,0:T(8,128)(2,1)}', space=vmem, size = 0x1000, scoped, tag = 'scratch operand']
  #allocation3 [shape = 'f32[16,1]{1,0:T(8,128)}', space=vmem, size = 0x2000, scoped, tag = 'scratch operand']
  #allocation4 [shape = 'f32[16,1]{1,0:T(8,128)}', space=vmem, size = 0x2000, scoped, tag = 'scratch operand']
  #allocation5 [shape = 'f32[16,128]{1,0:T(8,128)}', space=vmem, size = 0x2000, scoped, tag = 'scratch operand']
  %s0 = inlined_call_operand.hbm [shape: f32[2,16,128], index: 0, kind: input, shape index: {}]
  %s1 = inlined_call_operand.hbm [shape: bf16[2,16,128], index: 1, kind: input, shape index: {}]
  %s2 = inlined_call_operand.hbm [shape: bf16[2,16,128], index: 2, kind: input, shape index: {}]
  %s3 = inlined_call_operand.hbm [shape: f32[2,16,128], index: 3, kind: output, shape index: {}]
  %s4 = sld [smem:[#allocation0]]
  $region69: #{tpu_custom_call.1} parent=0
    _
  %s6 = ssub.s32 1, %s4
  %s7 = scalar_select 0, %s6, %s4
  $region1: #{tpu_custom_call.1} parent=0
    #allocation6 [shape = 'u8[16384]{0}', space=vmem, size = 0x4000, scoped, tag = 'input window, operand 0']
    #allocation7 [shape = 's32[2]{0}', space=sflag, size = 0x8, scoped, tag = 'scoped memory for tpu_custom_call.1']
    #allocation8 [shape = 's32[2]{0}', space=sflag, size = 0x8, scoped, tag = 'scoped memory for tpu_custom_call.1']
    #allocation9 [shape = 'u8[8192]{0}', space=vmem, size = 0x2000, scoped, tag = 'input window, operand 1']
    #allocation10 [shape = 's32[2]{0}', space=sflag, size = 0x8, scoped, tag = 'scoped memory for tpu_custom_call.1']
    #allocation11 [shape = 'u8[8192]{0}', space=vmem, size = 0x2000, scoped, tag = 'input window, operand 2']
    #allocation12 [shape = 'u8[16384]{0}', space=vmem, size = 0x4000, scoped, tag = 'output window, operand 0']
    %8 = vsyncpa [#allocation7], 0
    %s9 = scalar_lea.sflag [#allocation7], 1
    %10 = vsyncpa %s9, 0
    %11 = vsyncpa [#allocation10], 0
    %s12 = scalar_lea.sflag [#allocation10], 1
    %13 = vsyncpa %s12, 0
    %14 = vsyncpa [#allocation8], 0
    %s15 = scalar_lea.sflag [#allocation8], 1
    %16 = vsyncpa %s15, 0
    loop: start=0, step=1, limit=4
    $region2: #{tpu_custom_call.1} parent=1 // loop_pre_header
      _
    $region3: #{tpu_custom_call.1} parent=1 // loop_header
      %s18 = sphi 0, %s22
      %p19 = scmp.ge.s32.totalorder %s18, 4
      %s25 = sphi 0, %s44
      %s26 = sphi 0, %s40
      %s27 = sphi 0, %s36
      %s28 = sphi 0, %s25
      %s29 = sphi 0, %s26
      %s30 = sphi 0, %s27
      %s31 = sphi 0, %s28
      %s32 = sphi 0, %s29
      %s33 = sphi 0, %s30
      %s49 = sphi 0, %s51
      %s52 = sphi 0, %s49
      %s53 = sphi 0, %s52
      %s69 = sphi 0, %s53
      %s77 = sphi 0, %s79
      %s80 = sphi 0, %s77
      %s81 = sphi 0, %s80
      %s97 = sphi 0, %s81
      %s105 = sphi 0, %s107
      %s108 = sphi 0, %s105
      %s109 = sphi 0, %s108
      %s125 = sphi 0, %s109
      %s133 = sphi 0, %s135
      %s136 = sphi 0, %s133
      %s137 = sphi 0, %s136
      %s153 = sphi 0, %s137
    $region4: #{tpu_custom_call.1} parent=1 // loop_header_branch
      %21 = sbr.rel (%p19) target = $region8
    $region5: #{tpu_custom_call.1} parent=1 // loop_body
      %s23 = ssub.s32 %s18, 1
      %s24 = ssub.s32 %s18, 2
      %s34 = sadd.s32 1, %s27
      %p35 = scmp.ge.s32.totalorder %s34, 1
      %s36 = scalar_select %p35, 0, %s34
      %s37 = sadd.s32 1, %s26
      %s38 = scalar_select %p35, %s37, %s26
      %p39 = scmp.ge.s32.totalorder %s38, 1
      %s40 = scalar_select %p39, 0, %s38
      %s41 = sadd.s32 1, %s25
      %s42 = scalar_select %p39, %s41, %s25
      %p43 = scmp.ge.s32.totalorder %s42, 2
      %s44 = scalar_select %p43, 0, %s42
      %s45 = ssub.s32 %s25, %s44
      %s46 = ssub.s32 %s26, %s40
      %s47 = sor.u32 %s45, %s46
      %p48 = scmp.eq.s32.totalorder %s47, 0
      %s50 = sadd.s32 %s49, 1
      %s51 = scalar_select %p48, %s49, %s50
      %p54 = pneg %p48
      %p55 = scmp.eq.s32.totalorder %s18, 1
      %p56 = por %p54, %p55
      %p57 = scmp.ne.s32.totalorder %s49, %s52
      %p58 = scmp.eq.s32.totalorder %s18, 0
      %p59 = por %p57, %p58
      %p60 = scmp.ne.s32.totalorder %s49, %s52
      %p61 = scmp.eq.s32.totalorder %s23, 1
      %p62 = por %p60, %p61
      %p63 = scmp.ne.s32.totalorder %s52, %s53
      %p64 = scmp.eq.s32.totalorder %s23, 0
      %p65 = por %p63, %p64
      %p66 = scmp.ne.s32.totalorder %s52, %s53
      %p67 = scmp.eq.s32.totalorder %s24, 1
      %p68 = por %p66, %p67
      %p70 = scmp.ne.s32.totalorder %s53, %s69
      %p71 = scmp.eq.s32.totalorder %s24, 0
      %p72 = por %p70, %p71
      %s73 = ssub.s32 %s25, %s44
      %s74 = ssub.s32 %s27, %s36
      %s75 = sor.u32 %s73, %s74
      %p76 = scmp.eq.s32.totalorder %s75, 0
      %s78 = sadd.s32 %s77, 1
      %s79 = scalar_select %p76, %s77, %s78
      %p82 = pneg %p76
      %p83 = scmp.eq.s32.totalorder %s18, 1
      %p84 = por %p82, %p83
      %p85 = scmp.ne.s32.totalorder %s77, %s80
      %p86 = scmp.eq.s32.totalorder %s18, 0
      %p87 = por %p85, %p86
      %p88 = scmp.ne.s32.totalorder %s77, %s80
      %p89 = scmp.eq.s32.totalorder %s23, 1
      %p90 = por %p88, %p89
      %p91 = scmp.ne.s32.totalorder %s80, %s81
      %p92 = scmp.eq.s32.totalorder %s23, 0
      %p93 = por %p91, %p92
      %p94 = scmp.ne.s32.totalorder %s80, %s81
      %p95 = scmp.eq.s32.totalorder %s24, 1
      %p96 = por %p94, %p95
      %p98 = scmp.ne.s32.totalorder %s81, %s97
      %p99 = scmp.eq.s32.totalorder %s24, 0
      %p100 = por %p98, %p99
      %s101 = ssub.s32 %s25, %s44
      %s102 = ssub.s32 %s27, %s36
      %s103 = sor.u32 %s101, %s102
      %p104 = scmp.eq.s32.totalorder %s103, 0
      %s106 = sadd.s32 %s105, 1
      %s107 = scalar_select %p104, %s105, %s106
      %p110 = pneg %p104
      %p111 = scmp.eq.s32.totalorder %s18, 1
      %p112 = por %p110, %p111
      %p113 = scmp.ne.s32.totalorder %s105, %s108
      %p114 = scmp.eq.s32.totalorder %s18, 0
      %p115 = por %p113, %p114
      %p116 = scmp.ne.s32.totalorder %s105, %s108
      %p117 = scmp.eq.s32.totalorder %s23, 1
      %p118 = por %p116, %p117
      %p119 = scmp.ne.s32.totalorder %s108, %s109
      %p120 = scmp.eq.s32.totalorder %s23, 0
      %p121 = por %p119, %p120
      %p122 = scmp.ne.s32.totalorder %s108, %s109
      %p123 = scmp.eq.s32.totalorder %s24, 1
      %p124 = por %p122, %p123
      %p126 = scmp.ne.s32.totalorder %s109, %s125
      %p127 = scmp.eq.s32.totalorder %s24, 0
      %p128 = por %p126, %p127
      %s129 = ssub.s32 %s25, %s44
      %s130 = ssub.s32 %s26, %s40
      %s131 = sor.u32 %s129, %s130
      %p132 = scmp.eq.s32.totalorder %s131, 0
      %s134 = sadd.s32 %s133, 1
      %s135 = scalar_select %p132, %s133, %s134
      %p138 = pneg %p132
      %p139 = scmp.eq.s32.totalorder %s18, 1
      %p140 = por %p138, %p139
      %p141 = scmp.ne.s32.totalorder %s133, %s136
      %p142 = scmp.eq.s32.totalorder %s18, 0
      %p143 = por %p141, %p142
      %p144 = scmp.ne.s32.totalorder %s133, %s136
      %p145 = scmp.eq.s32.totalorder %s23, 1
      %p146 = por %p144, %p145
      %p147 = scmp.ne.s32.totalorder %s136, %s137
      %p148 = scmp.eq.s32.totalorder %s23, 0
      %p149 = por %p147, %p148
      %p150 = scmp.ne.s32.totalorder %s136, %s137
      %p151 = scmp.eq.s32.totalorder %s24, 1
      %p152 = por %p150, %p151
      %p154 = scmp.ne.s32.totalorder %s137, %s153
      %p155 = scmp.eq.s32.totalorder %s24, 0
      %p156 = por %p154, %p155
      %p157 = scmp.le.s32.totalorder 1, %s18
      %p158 = scmp.lt.s32.totalorder %s18, 3
      %p159 = pnand %p157, %p158
      %p160 = pneg %p159
      // Predicated region
      $region9: #{tpu_custom_call.1} parent=5 // pred_check
        _
      $region10: #{tpu_custom_call.1} parent=5 // pred_check_branch
        %162 = sbr.rel (%p159) target = $region12
      $region11: #{tpu_custom_call.1} parent=5 // pred_region
        %s163 = ssub.s32 %s18, 1
      $region12: #{tpu_custom_call.1} parent=5 // pred_fallthru
        _
      %p164 = scmp.lt.s32.totalorder %s18, 2
      // Predicated region
      $region13: #{tpu_custom_call.1} parent=5 // pred_check
        %p165 = pneg %p164
      $region14: #{tpu_custom_call.1} parent=5 // pred_check_branch
        %167 = sbr.rel (%p165) target = $region16
      $region15: #{tpu_custom_call.1} parent=5 // pred_region
        // Predicated region
        $region17: #{tpu_custom_call.1} parent=15 // pred_check
          %p168 = pneg %p59
        $region18: #{tpu_custom_call.1} parent=15 // pred_check_branch
          %170 = sbr.rel (%p168) target = $region20
        $region19: #{tpu_custom_call.1} parent=15 // pred_region
          %s171 = sand.u32 %s49, 1
          %s172 = scalar_lea.sflag [#allocation7], %s171
          %s173 = sand.u32 %s49, 1
          %s174 = smul.addr %s173, 16
          %s175 = scalar_lea.vmem [#allocation6], %s174
          %s176 = smul.u32 2, %s26
          %s178 = ssub.s32 256, 256
          %179 = vsyncadd %s172, %s178
          %s180 = smul.addr %s25, 2
          %s181 = sadd.s32 %s176, %s180
          %s182 = smul.addr %s181, 128
          %s183 = scalar_lea.hbm %s0, %s182
          %s184 = sshll.u32 %s175, 4
          %s185 = int_to_ptr.vmem [resolvable:$true] %s184
          %190 = dma.hbm_to_vmem [thread:$0]  %s183, 256, %s185, %s172, 128, 128, 8
        $region20: #{tpu_custom_call.1} parent=15 // pred_fallthru
          _
        // Predicated region
        $region21: #{tpu_custom_call.1} parent=15 // pred_check
          %p191 = pneg %p87
        $region22: #{tpu_custom_call.1} parent=15 // pred_check_branch
          %193 = sbr.rel (%p191) target = $region24
        $region23: #{tpu_custom_call.1} parent=15 // pred_region
          %s194 = sand.u32 %s18, 1
          %s195 = scalar_lea.sflag [#allocation10], %s194
          %s196 = sand.u32 %s77, 1
          %s197 = smul.addr %s196, 8
          %s198 = scalar_lea.vmem [#allocation9], %s197
          %s199 = smul.u32 2, %s27
          %s201 = ssub.s32 128, 128
          %202 = vsyncadd %s195, %s201
          %s203 = smul.addr %s25, 2
          %s204 = sadd.s32 %s199, %s203
          %s205 = smul.addr %s204, 64
          %s206 = scalar_lea.hbm %s1, %s205
          %s207 = sshll.u32 %s198, 4
          %s208 = int_to_ptr.vmem [resolvable:$true] %s207
          %213 = dma.hbm_to_vmem [thread:$0]  %s206, 128, %s208, %s195, 64, 64, 4
        $region24: #{tpu_custom_call.1} parent=15 // pred_fallthru
          _
        // Predicated region
        $region25: #{tpu_custom_call.1} parent=15 // pred_check
          %p214 = pneg %p115
        $region26: #{tpu_custom_call.1} parent=15 // pred_check_branch
          %216 = sbr.rel (%p214) target = $region28
        $region27: #{tpu_custom_call.1} parent=15 // pred_region
          %s217 = sand.u32 %s18, 1
          %s218 = scalar_lea.sflag [#allocation10], %s217
          %s219 = sand.u32 %s105, 1
          %s220 = smul.addr %s219, 8
          %s221 = scalar_lea.vmem [#allocation11], %s220
          %s222 = smul.u32 2, %s27
          %s224 = ssub.s32 128, 128
          %225 = vsyncadd %s218, %s224
          %s226 = smul.addr %s25, 2
          %s227 = sadd.s32 %s222, %s226
          %s228 = smul.addr %s227, 64
          %s229 = scalar_lea.hbm %s2, %s228
          %s230 = sshll.u32 %s221, 4
          %s231 = int_to_ptr.vmem [resolvable:$true] %s230
          %236 = dma.hbm_to_vmem [thread:$0]  %s229, 128, %s231, %s218, 64, 64, 4
        $region28: #{tpu_custom_call.1} parent=15 // pred_fallthru
          _
      $region16: #{tpu_custom_call.1} parent=5 // pred_fallthru
        _
      %p237 = scmp.le.s32.totalorder 1, %s18
      %p238 = scmp.lt.s32.totalorder %s18, 3
      %p239 = pnand %p237, %p238
      %p240 = pneg %p239
      // Predicated region
      $region29: #{tpu_custom_call.1} parent=5 // pred_check
        _
      $region30: #{tpu_custom_call.1} parent=5 // pred_check_branch
        %242 = sbr.rel (%p239) target = $region32
      $region31: #{tpu_custom_call.1} parent=5 // pred_region
        %s243 = ssub.s32 %s18, 1
        %s244 = sand.u32 %s52, 1
        %s245 = scalar_lea.sflag [#allocation7], %s244
        %s246 = sand.u32 %s52, 1
        %s247 = smul.addr %s246, 16
        %s248 = scalar_lea.vmem [#allocation6], %s247
        // Predicated region
        $region33: #{tpu_custom_call.1} parent=31 // pred_check
          %p249 = pneg %p65
        $region34: #{tpu_custom_call.1} parent=31 // pred_check_branch
          %251 = sbr.rel (%p249) target = $region36
        $region35: #{tpu_custom_call.1} parent=31 // pred_region
          %252 = dma.done %s245, 256
        $region36: #{tpu_custom_call.1} parent=31 // pred_fallthru
          _
        %s253 = sand.u32 %s23, 1
        %s254 = scalar_lea.sflag [#allocation10], %s253
        %s255 = sand.u32 %s80, 1
        %s256 = smul.addr %s255, 8
        %s257 = scalar_lea.vmem [#allocation9], %s256
        // Predicated region
        $region37: #{tpu_custom_call.1} parent=31 // pred_check
          %p258 = pneg %p93
        $region38: #{tpu_custom_call.1} parent=31 // pred_check_branch
          %260 = sbr.rel (%p258) target = $region40
        $region39: #{tpu_custom_call.1} parent=31 // pred_region
          %261 = dma.done %s254, 128
        $region40: #{tpu_custom_call.1} parent=31 // pred_fallthru
          _
        %s262 = sand.u32 %s23, 1
        %s263 = scalar_lea.sflag [#allocation10], %s262
        %s264 = sand.u32 %s108, 1
        %s265 = smul.addr %s264, 8
        %s266 = scalar_lea.vmem [#allocation11], %s265
        // Predicated region
        $region41: #{tpu_custom_call.1} parent=31 // pred_check
          %p267 = pneg %p121
        $region42: #{tpu_custom_call.1} parent=31 // pred_check_branch
          %269 = sbr.rel (%p267) target = $region44
        $region43: #{tpu_custom_call.1} parent=31 // pred_region
          %270 = dma.done %s263, 128
        $region44: #{tpu_custom_call.1} parent=31 // pred_fallthru
          _
        %s271 = sand.u32 %s52, 1
        %s272 = scalar_lea.sflag [#allocation7], %s271
        %s273 = sand.u32 %s52, 1
        %s274 = smul.addr %s273, 16
        %s275 = scalar_lea.vmem [#allocation6], %s274
        %p276 = pneg %p65
        %p277 = pneg %p62
        %s278 = sand.u32 %s23, 1
        %s279 = scalar_lea.sflag [#allocation10], %s278
        %s280 = sand.u32 %s80, 1
        %s281 = smul.addr %s280, 8
        %s282 = scalar_lea.vmem [#allocation9], %s281
        %p283 = pneg %p93
        %p284 = pneg %p90
        %s285 = sand.u32 %s23, 1
        %s286 = scalar_lea.sflag [#allocation10], %s285
        %s287 = sand.u32 %s108, 1
        %s288 = smul.addr %s287, 8
        %s289 = scalar_lea.vmem [#allocation11], %s288
        %p290 = pneg %p121
        %p291 = pneg %p118
        %p292 = pneg %p149
        %p293 = pneg %p146
        %s294 = sand.u32 %s136, 1
        %s295 = scalar_lea.sflag [#allocation8], %s294
        %s296 = sand.u32 %s136, 1
        %s297 = smul.addr %s296, 16
        %s298 = scalar_lea.vmem [#allocation12], %s297
        %s299 = smul.u32 2, %s29
        %s300 = smul.u32 2, %s30
        %s301 = smul.u32 2, %s30
        %s302 = smul.u32 2, %s29
        %p304 = scmp.eq.s32.totalorder %s30, 0
        // Predicated region
        $region45: #{tpu_custom_call.1} parent=31 // pred_check
          %p305 = pneg %p304
        $region46: #{tpu_custom_call.1} parent=31 // pred_check_branch
          %307 = sbr.rel (%p305) target = $region48
        $region47: #{tpu_custom_call.1} parent=31 // pred_region
          %v308 = vld [vmem:[%s248] sm:$0xff]
          %v309 = vld [vmem:[%s248 + $0x8] sm:$0xff]
          %v310 = vmul.f32 %v308, 0.17677669
          %v311 = vmul.f32 %v309, 0.17677669
          %v312 = vpack.c.bf16 %v311, %v310
          %v314 = vunpack.c.l.b16 %v312
          %v315 = vunpack.c.h.b16 %v312
          %v316 = vpack.c.b16 %v314, %v314
          %v317 = vpack.c.b16 %v315, %v315
          %320 = vst [vmem:[#allocation2] sm:$0xf] %v316
          %321 = vst [vmem:[#allocation2 + $0x4] sm:$0xf] %v317
          %vm322 = vcmask 7168
          %323 = vst.msk [vmem:[#allocation3] sm:$0xff] %vm322, -inf
          %324 = vst.msk [vmem:[#allocation3 + $0x8] sm:$0xff] %vm322, -inf
          %325 = vst.msk [vmem:[#allocation4] sm:$0xff] %vm322, 0.0
          %326 = vst.msk [vmem:[#allocation4 + $0x8] sm:$0xff] %vm322, 0.0
          %327 = vst [vmem:[#allocation5] sm:$0xff] 0.0
          %328 = vst [vmem:[#allocation5 + $0x8] sm:$0xff] 0.0
        $region48: #{tpu_custom_call.1} parent=31 // pred_fallthru
          _
        %v329 = vld [vmem:[#allocation2] sm:$0xf]
        %v330 = vld [vmem:[#allocation2 + $0x4] sm:$0xf]
        %v331 = vld [vmem:[%s257] sm:$0xf]
        %v332 = vld [vmem:[%s257 + $0x4] sm:$0xf]
        %v333 = vld [vmem:[%s266] sm:$0xf]
        %v334 = vld [vmem:[%s266 + $0x4] sm:$0xf]
        %v337 = vunpack.c.l.b16 %v329
        %v338 = vunpack.c.l.b16 %v330
        %v339 = vpack.c.b16 %v338, %v337
        %v343 = vunpack.c.l.b16 %v331
        %v344 = vunpack.c.l.b16 %v332
        %v345 = vpack.c.b16 %v344, %v343
        %347 = vmatprep.subr.bf16.mxu0 0
        %348 = vmatpush1.bf16.xpose.msra.mxu0 0
        %349 = vmatprep.subr.bf16.mxu0 0
        %350 = vmatpush1.bf16.xpose.msra.mxu0 0
        %351 = vmatprep.subr.bf16.mxu0 0
        %352 = vmatpush1.bf16.xpose.msra.mxu0 0
        %353 = vmatprep.subr.bf16.mxu0 0
        %354 = vmatpush1.bf16.xpose.msra.mxu0 0
        %355 = vmatprep.subr.bf16.mxu0 0
        %356 = vmatpush1.bf16.xpose.msra.mxu0 0
        %357 = vmatprep.subr.bf16.mxu0 0
        %358 = vmatpush1.bf16.xpose.msra.mxu0 0
        %359 = vmatprep.subr.bf16.mxu0 0
        %360 = vmatpush1.bf16.xpose.msra.mxu0 0
        %361 = vmatprep.subr.bf16.mxu0 0
        %362 = vmatpush1.bf16.xpose.msra.mxu0 %v345
        %363 = vmatprep.subr.bf16.mxu0 0
        %364 = vmatpush2.bf16.xpose.msra.mxu0 0
        %365 = vmatprep.subr.bf16.mxu0 0
        %366 = vmatpush2.bf16.xpose.msra.mxu0 0
        %367 = vmatprep.subr.bf16.mxu0 0
        %368 = vmatpush2.bf16.xpose.msra.mxu0 0
        %369 = vmatprep.subr.bf16.mxu0 0
        %370 = vmatpush2.bf16.xpose.msra.mxu0 0
        %371 = vmatprep.subr.bf16.mxu0 0
        %372 = vmatpush2.bf16.xpose.msra.mxu0 0
        %373 = vmatprep.subr.bf16.mxu0 0
        %374 = vmatpush2.bf16.xpose.msra.mxu0 0
        %375 = vmatprep.subr.bf16.mxu0 0
        %376 = vmatpush2.bf16.xpose.msra.mxu0 0
        %377 = vmatprep.subr.bf16.mxu0 0
        %378 = vmatpush2.bf16.xpose.msra.mxu0 0
        %379 = vmatprep.mubr.bf16.mxu0 0
        %380 = vmatmul.mubr.bf16.gmra.mxu0 %v339
        %v381 = vpop.f32.mrf.mxu0
        %v382 = vadd.f32 0.0, %v381
        %v383 = vpop.f32.mrf.mxu0
        %v384 = vpop.f32.mrf.mxu0
        %v385 = vadd.f32 0.0, %v384
        %v386 = vpop.f32.mrf.mxu0
        %387 = vdwg.mxu0
        %p388 = scmp.ne.s32.totalorder %s30, 0
        // Predicated region
        $region49: #{tpu_custom_call.1} parent=31 // pred_check
          %p389 = pneg %p388
        $region50: #{tpu_custom_call.1} parent=31 // pred_check_branch
          %391 = sbr.rel (%p389) target = $region52
        $region51: #{tpu_custom_call.1} parent=31 // pred_region
          %v392 = vld [vmem:[#allocation3] sm:$0xff]
          %v393 = vld [vmem:[#allocation3 + $0x8] sm:$0xff]
          %vm394 = vcmask 130048
          %v395 = vsel %vm394, %v382, -inf
          %396 = vmax.xlane.f32.xlu0 %v395
          %v397 = vpop.xlane.xlu0 %396
          %v398 = vsel %vm394, %v385, -inf
          %399 = vmax.xlane.f32.xlu0 %v398
          %v400 = vpop.xlane.xlu0 %399
          %v401 = vmax.f32 %v392, %v397
          %v402 = vmax.f32 %v393, %v400
          %v403 = vsub.f32 %v392, %v401
          %v404 = vsub.f32 %v393, %v402
          %v405 = vmul.f32 %v403, 1.442695
          %v406 = vpow.pop %v405
          %v407 = vmul.f32 %v404, 1.442695
          %v408 = vpow.pop %v407
          %410 = vset.pattern.permute.xlu0 0
          %411 = vperm.xlu0 %410, %v401
          %v412 = vpop.permute.xlu0 %411
          %415 = vset.pattern.permute.xlu0 0
          %416 = vperm.xlu0 %415, %v402
          %v417 = vpop.permute.xlu0 %416
          %v419 = vsub.f32 %v382, %v412
          %v420 = vsub.f32 %v385, %v417
          %v421 = vmul.f32 %v419, 1.442695
          %v422 = vpow.pop %v421
          %v423 = vmul.f32 %v420, 1.442695
          %v424 = vpow.pop %v423
          %v425 = vld [vmem:[#allocation4] sm:$0xff]
          %v426 = vld [vmem:[#allocation4 + $0x8] sm:$0xff]
          %v427 = vmul.f32 %v406, %v425
          %v428 = vmul.f32 %v408, %v426
          %v429 = vsel %vm394, %v422, 0.0
          %430 = vadd.xlane.f32.xlu0 %v429
          %v431 = vpop.xlane.xlu0 %430
          %v432 = vsel %vm394, %v424, 0.0
          %433 = vadd.xlane.f32.xlu0 %v432
          %v434 = vpop.xlane.xlu0 %433
          %v435 = vadd.f32 %v427, %v431
          %v436 = vadd.f32 %v428, %v434
          %vm437 = vcmask 7168
          %438 = vst.msk [vmem:[#allocation4] sm:$0xff] %vm437, %v435
          %439 = vst.msk [vmem:[#allocation4 + $0x8] sm:$0xff] %vm437, %v436
          %v440 = vld [vmem:[#allocation5] sm:$0xff]
          %v441 = vld [vmem:[#allocation5 + $0x8] sm:$0xff]
          %443 = vset.pattern.permute.xlu0 0
          %444 = vperm.xlu0 %443, %v406
          %v445 = vpop.permute.xlu0 %444
          %448 = vset.pattern.permute.xlu0 0
          %449 = vperm.xlu0 %448, %v408
          %v450 = vpop.permute.xlu0 %449
          %v452 = vmul.f32 %v445, %v440
          %v453 = vmul.f32 %v450, %v441
          %v454 = vpack.c.bf16 %v424, %v422
          %v457 = vunpack.c.l.b16 %v333
          %v458 = vunpack.c.l.b16 %v334
          %v459 = vpack.c.b16 %v458, %v457
          %v462 = vsel %vm394, %v454, 0
          %464 = vmatprep.subr.bf16.mxu0 0
          %465 = vmatpush1.bf16.msra.mxu0 0
          %466 = vmatprep.subr.bf16.mxu0 0
          %467 = vmatpush1.bf16.msra.mxu0 0
          %468 = vmatprep.subr.bf16.mxu0 0
          %469 = vmatpush1.bf16.msra.mxu0 0
          %470 = vmatprep.subr.bf16.mxu0 0
          %471 = vmatpush1.bf16.msra.mxu0 0
          %472 = vmatprep.subr.bf16.mxu0 0
          %473 = vmatpush1.bf16.msra.mxu0 0
          %474 = vmatprep.subr.bf16.mxu0 0
          %475 = vmatpush1.bf16.msra.mxu0 0
          %476 = vmatprep.subr.bf16.mxu0 0
          %477 = vmatpush1.bf16.msra.mxu0 0
          %478 = vmatprep.subr.bf16.mxu0 0
          %479 = vmatpush1.bf16.msra.mxu0 %v459
          %480 = vmatprep.subr.bf16.mxu0 0
          %481 = vmatpush2.bf16.msra.mxu0 0
          %482 = vmatprep.subr.bf16.mxu0 0
          %483 = vmatpush2.bf16.msra.mxu0 0
          %484 = vmatprep.subr.bf16.mxu0 0
          %485 = vmatpush2.bf16.msra.mxu0 0
          %486 = vmatprep.subr.bf16.mxu0 0
          %487 = vmatpush2.bf16.msra.mxu0 0
          %488 = vmatprep.subr.bf16.mxu0 0
          %489 = vmatpush2.bf16.msra.mxu0 0
          %490 = vmatprep.subr.bf16.mxu0 0
          %491 = vmatpush2.bf16.msra.mxu0 0
          %492 = vmatprep.subr.bf16.mxu0 0
          %493 = vmatpush2.bf16.msra.mxu0 0
          %494 = vmatprep.subr.bf16.mxu0 0
          %495 = vmatpush2.bf16.msra.mxu0 0
          %496 = vmatprep.mubr.bf16.mxu0 0
          %497 = vmatmul.mubr.bf16.gmra.mxu0 %v462
          %v498 = vpop.f32.mrf.mxu0
          %v499 = vadd.f32 0.0, %v498
          %v500 = vpop.f32.mrf.mxu0
          %v501 = vpop.f32.mrf.mxu0
          %v502 = vadd.f32 0.0, %v501
          %v503 = vpop.f32.mrf.mxu0
          %504 = vdwg.mxu0
          %v505 = vadd.f32 %v452, %v499
          %v506 = vadd.f32 %v453, %v502
          %507 = vst [vmem:[#allocation5] sm:$0xff] %v505
          %508 = vst [vmem:[#allocation5 + $0x8] sm:$0xff] %v506
          %509 = vst.msk [vmem:[#allocation3] sm:$0xff] %vm437, %v401
          %510 = vst.msk [vmem:[#allocation3 + $0x8] sm:$0xff] %vm437, %v402
        $region52: #{tpu_custom_call.1} parent=31 // pred_fallthru
          _
        // Predicated region
        $region53: #{tpu_custom_call.1} parent=31 // pred_check
          %p511 = pneg %p304
        $region54: #{tpu_custom_call.1} parent=31 // pred_check_branch
          %513 = sbr.rel (%p511) target = $region56
        $region55: #{tpu_custom_call.1} parent=31 // pred_region
          %s514 = smul.u32 %s30, 16
          %v515 = vlaneseq
          %v516 = vand.u32 %v515, 127
          %v517 = vstv %s514
          %v518 = vadd.s32 %v517, %v516
          %vm519 = vcmp.lt.s32.totalorder %v518, 8
          %v520 = vsel %vm519, %v382, -inf
          %v521 = vsel %vm519, %v385, -inf
          %v522 = vld [vmem:[#allocation3] sm:$0xff]
          %v523 = vld [vmem:[#allocation3 + $0x8] sm:$0xff]
          %vm524 = vcmask 130048
          %v525 = vsel %vm524, %v520, -inf
          %526 = vmax.xlane.f32.xlu0 %v525
          %v527 = vpop.xlane.xlu0 %526
          %v528 = vsel %vm524, %v521, -inf
          %529 = vmax.xlane.f32.xlu0 %v528
          %v530 = vpop.xlane.xlu0 %529
          %v531 = vmax.f32 %v522, %v527
          %v532 = vmax.f32 %v523, %v530
          %v533 = vsub.f32 %v522, %v531
          %v534 = vsub.f32 %v523, %v532
          %v535 = vmul.f32 %v533, 1.442695
          %v536 = vpow.pop %v535
          %v537 = vmul.f32 %v534, 1.442695
          %v538 = vpow.pop %v537
          %540 = vset.pattern.permute.xlu0 0
          %541 = vperm.xlu0 %540, %v531
          %v542 = vpop.permute.xlu0 %541
          %545 = vset.pattern.permute.xlu0 0
          %546 = vperm.xlu0 %545, %v532
          %v547 = vpop.permute.xlu0 %546
          %v549 = vsub.f32 %v520, %v542
          %v550 = vsub.f32 %v521, %v547
          %v551 = vmul.f32 %v549, 1.442695
          %v552 = vpow.pop %v551
          %v553 = vmul.f32 %v550, 1.442695
          %v554 = vpow.pop %v553
          %v555 = vld [vmem:[#allocation4] sm:$0xff]
          %v556 = vld [vmem:[#allocation4 + $0x8] sm:$0xff]
          %v557 = vmul.f32 %v536, %v555
          %v558 = vmul.f32 %v538, %v556
          %v559 = vsel %vm524, %v552, 0.0
          %560 = vadd.xlane.f32.xlu0 %v559
          %v561 = vpop.xlane.xlu0 %560
          %v562 = vsel %vm524, %v554, 0.0
          %563 = vadd.xlane.f32.xlu0 %v562
          %v564 = vpop.xlane.xlu0 %563
          %v565 = vadd.f32 %v557, %v561
          %v566 = vadd.f32 %v558, %v564
          %vm567 = vcmask 7168
          %568 = vst.msk [vmem:[#allocation4] sm:$0xff] %vm567, %v565
          %569 = vst.msk [vmem:[#allocation4 + $0x8] sm:$0xff] %vm567, %v566
          %v570 = vld [vmem:[#allocation5] sm:$0xff]
          %v571 = vld [vmem:[#allocation5 + $0x8] sm:$0xff]
          %573 = vset.pattern.permute.xlu0 0
          %574 = vperm.xlu0 %573, %v536
          %v575 = vpop.permute.xlu0 %574
          %578 = vset.pattern.permute.xlu0 0
          %579 = vperm.xlu0 %578, %v538
          %v580 = vpop.permute.xlu0 %579
          %v582 = vmul.f32 %v575, %v570
          %v583 = vmul.f32 %v580, %v571
          %v584 = vpack.c.bf16 %v554, %v552
          %v587 = vunpack.c.l.b16 %v333
          %v588 = vunpack.c.l.b16 %v334
          %v589 = vpack.c.b16 %v588, %v587
          %v592 = vsel %vm524, %v584, 0
          %594 = vmatprep.subr.bf16.mxu0 0
          %595 = vmatpush1.bf16.msra.mxu0 0
          %596 = vmatprep.subr.bf16.mxu0 0
          %597 = vmatpush1.bf16.msra.mxu0 0
          %598 = vmatprep.subr.bf16.mxu0 0
          %599 = vmatpush1.bf16.msra.mxu0 0
          %600 = vmatprep.subr.bf16.mxu0 0
          %601 = vmatpush1.bf16.msra.mxu0 0
          %602 = vmatprep.subr.bf16.mxu0 0
          %603 = vmatpush1.bf16.msra.mxu0 0
          %604 = vmatprep.subr.bf16.mxu0 0
          %605 = vmatpush1.bf16.msra.mxu0 0
          %606 = vmatprep.subr.bf16.mxu0 0
          %607 = vmatpush1.bf16.msra.mxu0 0
          %608 = vmatprep.subr.bf16.mxu0 0
          %609 = vmatpush1.bf16.msra.mxu0 %v589
          %610 = vmatprep.subr.bf16.mxu0 0
          %611 = vmatpush2.bf16.msra.mxu0 0
          %612 = vmatprep.subr.bf16.mxu0 0
          %613 = vmatpush2.bf16.msra.mxu0 0
          %614 = vmatprep.subr.bf16.mxu0 0
          %615 = vmatpush2.bf16.msra.mxu0 0
          %616 = vmatprep.subr.bf16.mxu0 0
          %617 = vmatpush2.bf16.msra.mxu0 0
          %618 = vmatprep.subr.bf16.mxu0 0
          %619 = vmatpush2.bf16.msra.mxu0 0
          %620 = vmatprep.subr.bf16.mxu0 0
          %621 = vmatpush2.bf16.msra.mxu0 0
          %622 = vmatprep.subr.bf16.mxu0 0
          %623 = vmatpush2.bf16.msra.mxu0 0
          %624 = vmatprep.subr.bf16.mxu0 0
          %625 = vmatpush2.bf16.msra.mxu0 0
          %626 = vmatprep.mubr.bf16.mxu0 0
          %627 = vmatmul.mubr.bf16.gmra.mxu0 %v592
          %v628 = vpop.f32.mrf.mxu0
          %v629 = vadd.f32 0.0, %v628
          %v630 = vpop.f32.mrf.mxu0
          %v631 = vpop.f32.mrf.mxu0
          %v632 = vadd.f32 0.0, %v631
          %v633 = vpop.f32.mrf.mxu0
          %634 = vdwg.mxu0
          %v635 = vadd.f32 %v582, %v629
          %v636 = vadd.f32 %v583, %v632
          %637 = vst [vmem:[#allocation5] sm:$0xff] %v635
          %638 = vst [vmem:[#allocation5 + $0x8] sm:$0xff] %v636
          %639 = vst.msk [vmem:[#allocation3] sm:$0xff] %vm567, %v531
          %640 = vst.msk [vmem:[#allocation3 + $0x8] sm:$0xff] %vm567, %v532
          %v641 = vld [vmem:[#allocation4] sm:$0xff]
          %v642 = vld [vmem:[#allocation4 + $0x8] sm:$0xff]
          %v643 = vrcp.pop %v641
          %v644 = vrcp.pop %v642
          %v645 = vld [vmem:[#allocation5] sm:$0xff]
          %v646 = vld [vmem:[#allocation5 + $0x8] sm:$0xff]
          %648 = vset.pattern.permute.xlu0 0
          %649 = vperm.xlu0 %648, %v643
          %v650 = vpop.permute.xlu0 %649
          %653 = vset.pattern.permute.xlu0 0
          %654 = vperm.xlu0 %653, %v644
          %v655 = vpop.permute.xlu0 %654
          %v657 = vmul.f32 %v645, %v650
          %v658 = vmul.f32 %v646, %v655
          %659 = vst [vmem:[%s298] sm:$0xff] %v657
          %660 = vst [vmem:[%s298 + $0x8] sm:$0xff] %v658
        $region56: #{tpu_custom_call.1} parent=31 // pred_fallthru
          _
        %s661 = sand.u32 %s136, 1
        %s662 = scalar_lea.sflag [#allocation8], %s661
        %s663 = sand.u32 %s136, 1
        %s664 = smul.addr %s663, 16
        %s665 = scalar_lea.vmem [#allocation12], %s664
        // Predicated region
        $region57: #{tpu_custom_call.1} parent=31 // pred_check
          %p666 = pneg %p146
        $region58: #{tpu_custom_call.1} parent=31 // pred_check_branch
          %668 = sbr.rel (%p666) target = $region60
        $region59: #{tpu_custom_call.1} parent=31 // pred_region
          %s669 = smul.u32 2, %s29
          %s671 = ssub.s32 256, 256
          %672 = vsyncadd %s662, %s671
          %s673 = smul.addr %s28, 2
          %s674 = sadd.s32 %s669, %s673
          %s675 = smul.addr %s674, 128
          %s676 = scalar_lea.hbm %s3, %s675
          %s677 = sshll.u32 %s665, 4
          %s678 = int_to_ptr.vmem [resolvable:$true] %s677
          %683 = dma.vmem_to_hbm [thread:$0]  %s678, 256, %s676, %s662, 128, 128, 8
        $region60: #{tpu_custom_call.1} parent=31 // pred_fallthru
          _
      $region32: #{tpu_custom_call.1} parent=5 // pred_fallthru
        _
      %p684 = scmp.le.s32.totalorder 2, %s18
      // Predicated region
      $region61: #{tpu_custom_call.1} parent=5 // pred_check
        %p685 = pneg %p684
      $region62: #{tpu_custom_call.1} parent=5 // pred_check_branch
        %687 = sbr.rel (%p685) target = $region64
      $region63: #{tpu_custom_call.1} parent=5 // pred_region
        %s688 = ssub.s32 %s18, 2
        // Predicated region
        $region65: #{tpu_custom_call.1} parent=63 // pred_check
          %p689 = pneg %p152
        $region66: #{tpu_custom_call.1} parent=63 // pred_check_branch
          %691 = sbr.rel (%p689) target = $region68
        $region67: #{tpu_custom_call.1} parent=63 // pred_region
          %s692 = sand.u32 %s137, 1
          %s693 = scalar_lea.sflag [#allocation8], %s692
          %s694 = sand.u32 %s137, 1
          %s695 = smul.addr %s694, 16
          %s696 = scalar_lea.vmem [#allocation12], %s695
          %697 = dma.done %s693, 256
        $region68: #{tpu_custom_call.1} parent=63 // pred_fallthru
          _
      $region64: #{tpu_custom_call.1} parent=5 // pred_fallthru
        _
    $region6: #{tpu_custom_call.1} parent=1 // loop_footer
      %s22 = sadd.s32 1, %s18
    $region7: #{tpu_custom_call.1} parent=1 // loop_footer_branch
      %17 = sbr.rel target = $region3
    $region8: #{tpu_custom_call.1} parent=1 // loop_exit
      _
    %698 = vsyncpa [#allocation7], 1
    %s699 = scalar_lea.sflag [#allocation7], 1
    %700 = vsyncpa %s699, 1
    %701 = vsyncpa [#allocation10], 1
    %s702 = scalar_lea.sflag [#allocation10], 1
    %703 = vsyncpa %s702, 1
    %704 = vsyncpa [#allocation8], 1
    %s705 = scalar_lea.sflag [#allocation8], 1
    %706 = vsyncpa %s705, 1

</llo_original>
